<compile_context>
chip_gen: v6e
topology: v6e:2x2x1
jax: 0.10.0
libtpu: 0.0.40
codegen_flags: <defaults>
</compile_context>

<pallas_src>
import functools

import jax
import jax.numpy as jnp
from jax.experimental import pallas as pl
from jax.experimental.pallas import tpu as pltpu

BN_EPS = 1e-5


def _physical_vmem_bytes():
    """Per-core VMEM capacity; conservative 64 MiB (v7x) fallback."""
    try:
        return int(pltpu.get_tpu_info().vmem_capacity_bytes)
    except Exception:
        return 64 * 1024 * 1024


def prediction_kernel(x_ref, w1_ref, g_ref, beta_ref, w2_ref, b2_ref, o_ref,
                      h_ref, sum_ref, ssq_ref, scale_ref, shift_ref,
                      *, block_b, batch):
    p = pl.program_id(0)          # 0 = stats pass, 1 = apply pass
    i = pl.program_id(1)          # batch-tile index
    row0 = pl.multiple_of(i * block_b, block_b)

    @pl.when(p == 0)
    def _stats_pass():
        @pl.when(i == 0)
        def _init():
            sum_ref[...] = jnp.zeros_like(sum_ref)
            ssq_ref[...] = jnp.zeros_like(ssq_ref)

        # Linear(256->128) on the MXU; bf16 operands, f32 accumulation.
        # layer-1 bias omitted: exactly cancelled by the BN mean subtraction.
        h = jnp.dot(x_ref[...].astype(jnp.bfloat16), w1_ref[...],
                    preferred_element_type=jnp.float32)              # [Bt, 128] f32

        # One traversal of h for both batch statistics (f32 accumulators).
        sum_ref[...] += jnp.sum(h, axis=0, keepdims=True)
        ssq_ref[...] += jnp.sum(h * h, axis=0, keepdims=True)

        # Keep the hidden activation on-chip for the apply pass.
        h_ref[pl.ds(row0, block_b), :] = h.astype(h_ref.dtype)

    @pl.when(p == 1)
    def _apply_pass():
        # Fold BN into per-channel scale/shift ONCE (hoisted out of the tile loop).
        @pl.when(i == 0)
        def _fold_bn():
            inv_n = jnp.float32(1.0 / batch)
            mean = sum_ref[...] * inv_n                               # [1, 128]
            # Clamp: E[h^2]-E[h]^2 can go slightly negative via f32 cancellation.
            var = jnp.maximum(ssq_ref[...] * inv_n - mean * mean, 0.0)
            scale = g_ref[...] * jax.lax.rsqrt(var + BN_EPS)          # [1, 128]
            scale_ref[...] = scale
            shift_ref[...] = beta_ref[...] - mean * scale             # [1, 128]

        h = h_ref[pl.ds(row0, block_b), :].astype(jnp.float32)        # [Bt, 128]
        h = jnp.maximum(h * scale_ref[...] + shift_ref[...], 0.0)     # BN+ReLU, one FMA
        h = h.astype(jnp.bfloat16)

        # Linear(128->256) on the MXU; bf16 operands, f32 accumulation.
        o_ref[...] = (jnp.dot(h, w2_ref[...], preferred_element_type=jnp.float32)
                      + b2_ref[...]).astype(o_ref.dtype)


def prediction_forward(x, w1_t, b1, gamma, beta, w2_t, b2, *,
                       block_b=None, out_dtype=jnp.float32):
    """x: [B, 256] f32. w1_t: [256, 128], w2_t: [128, 256] (pre-transposed, [in, out])."""
    del b1  # layer-1 bias is exactly cancelled by training-mode BatchNorm.
    B, f_in = x.shape
    assert f_in == 256 and B % 8 == 0, "batch must be a multiple of 8"

    if block_b is None:
        # HBM-bound kernel: prefer large batch tiles (amortize per-step overhead).
        block_b = next((c for c in (2048, 1024, 512, 256, 128, 64, 32, 16, 8)
                        if B % c == 0), B)
    assert B % block_b == 0 and block_b % 8 == 0
    nt = B // block_b

    vmem_cap = _physical_vmem_bytes()

    # Hidden-activation slab: f32 when it comfortably fits, bf16 when it would crowd
    # VMEM (e.g. large B on v7x's 64 MiB).
    h_dtype = jnp.float32 if B * 128 * 4 <= vmem_cap // 4 else jnp.bfloat16
    slab_bytes = B * 128 * jnp.dtype(h_dtype).itemsize

    # Dynamic VMEM budget: slab + x/out double buffers + resident params + margin.
    tile_io_bytes = 2 * 2 * block_b * 256 * 4                   # x, out; 2 buffers each
    param_bytes = 2 * ((256 * 128 + 128 * 256) * 2 + (128 + 128 + 256) * 4)
    need = slab_bytes + tile_io_bytes + param_bytes + (2 << 20)  # small scratch margin
    vmem_limit = int(min(max(need + (4 << 20), 24 << 20), int(vmem_cap * 0.9)))
    assert need < vmem_limit, (
        "hidden slab does not fit VMEM; use the HBM-spill two-call variant "
        "(see TODO(synk) at top of file)")

    w1_bf = w1_t.astype(jnp.bfloat16)
    w2_bf = w2_t.astype(jnp.bfloat16)
    gamma = gamma.reshape(1, 128).astype(jnp.float32)
    beta = beta.reshape(1, 128).astype(jnp.float32)
    b2 = b2.reshape(1, 256).astype(jnp.float32)

    kernel = functools.partial(prediction_kernel, block_b=block_b, batch=B)

    grid_spec = pltpu.PrefetchScalarGridSpec(
        num_scalar_prefetch=0,
        grid=(2, nt),
        in_specs=[
            # x tiles: consumed in phase 0; during phase 1 stay pinned on the LAST
            # block fetched so no redundant DMA is issued at the phase transition.
            pl.BlockSpec((block_b, 256),
                         lambda p, i: (i * (1 - p) + (nt - 1) * p, 0)),
            pl.BlockSpec((256, 128), lambda p, i: (0, 0)),   # W1 (resident, bf16)
            pl.BlockSpec((1, 128), lambda p, i: (0, 0)),     # gamma
            pl.BlockSpec((1, 128), lambda p, i: (0, 0)),     # beta
            pl.BlockSpec((128, 256), lambda p, i: (0, 0)),   # W2 (resident, bf16)
            pl.BlockSpec((1, 256), lambda p, i: (0, 0)),     # b2
        ],
        # Output tiles are only produced in phase 1; during phase 0 everything maps to
        # block 0, which is fully overwritten at (p=1, i=0) before its final writeback.
        out_specs=pl.BlockSpec((block_b, 256), lambda p, i: (i * p, 0)),
        scratch_shapes=[
            pltpu.VMEM((B, 128), h_dtype),       # full hidden activation (on-chip)
            pltpu.VMEM((1, 128), jnp.float32),   # sum(h)
            pltpu.VMEM((1, 128), jnp.float32),   # sum(h*h)
            pltpu.VMEM((1, 128), jnp.float32),   # folded BN scale
            pltpu.VMEM((1, 128), jnp.float32),   # folded BN shift
        ],
    )

    cost = pl.CostEstimate(
        flops=4 * B * 256 * 128,                       # two B x 256 x 128 matmuls
        transcendentals=128,                           # one rsqrt per channel
        bytes_accessed=2 * B * 1024 + 2 * 2 * 256 * 128 + 4 * (128 + 128 + 256),
    )

    return pl.pallas_call(
        kernel,
        out_shape=jax.ShapeDtypeStruct((B, 256), out_dtype),
        grid_spec=grid_spec,
        cost_estimate=cost,
        compiler_params=pltpu.CompilerParams(
            # Both axes are sequential: the batch-tile axis carries the stats
            # accumulator in phase 0 and the phase axis is an ordering dependency.
            dimension_semantics=("arbitrary", "arbitrary"),
            vmem_limit_bytes=vmem_limit,
        ),
    )(x, w1_bf, gamma, beta, w2_bf, b2)


def reference_forward(x, w1_t, b1, gamma, beta, w2_t, b2):
    """Pure-f32 JAX reference matching PyTorch training-mode semantics (incl. b1)."""
    h = x @ w1_t + b1
    mean = jnp.mean(h, axis=0, keepdims=True)
    var = jnp.mean((h - mean) ** 2, axis=0, keepdims=True)
    h = (h - mean) / jnp.sqrt(var + BN_EPS) * gamma + beta
    h = jnp.maximum(h, 0.0)
    return h @ w2_t + b2


if __name__ == "__main__":
    key = jax.random.PRNGKey(0)
    k_x, k_w1, k_b1, k_w2, k_b2 = jax.random.split(key, 5)

    B = 256  # small batch; block_b=128 below exercises the tiled 2-phase pipeline

    x = jax.random.normal(k_x, (B, 256), dtype=jnp.float32)

    # PyTorch Linear shapes are W1 [128,256], W2 [256,128]; we store them transposed
    # ([in, out]) so the kernel does plain row-major MXU matmuls.
    w1_t = jax.random.normal(k_w1, (256, 128), dtype=jnp.float32) * (1.0 / jnp.sqrt(256.0))
    b1 = jax.random.normal(k_b1, (1, 128), dtype=jnp.float32) * 0.01
    gamma = jnp.ones((1, 128), dtype=jnp.float32)    # BatchNorm1d default weight
    beta = jnp.zeros((1, 128), dtype=jnp.float32)    # BatchNorm1d default bias
    w2_t = jax.random.normal(k_w2, (128, 256), dtype=jnp.float32) * (1.0 / jnp.sqrt(128.0))
    b2 = jax.random.normal(k_b2, (1, 256), dtype=jnp.float32) * 0.01

    out = prediction_forward(x, w1_t, b1, gamma, beta, w2_t, b2, block_b=128)
    out = jax.block_until_ready(out)

    ref = reference_forward(x, w1_t, b1, gamma, beta, w2_t, b2)
    assert out.shape == (B, 256)
    max_err = float(jnp.max(jnp.abs(out - ref)))
    # bf16 MXU operands (f32 accumulation) -> ~1e-2-level deltas vs the pure-f32 ref.
    assert jnp.allclose(out, ref, atol=5e-2, rtol=5e-2), f"mismatch vs reference (max abs err {max_err})"

    print("KERNEL_OK")
</pallas_src>

<mosaic_0001>
module attributes {stable_mosaic.version = 11 : i64} {
  func.func @prediction_kernel(%arg0: i32, %arg1: i32, %arg2: memref<128x256xf32, #tpu.memory_space<vmem>>, %arg3: memref<256x128xbf16, #tpu.memory_space<vmem>>, %arg4: memref<1x128xf32, #tpu.memory_space<vmem>>, %arg5: memref<1x128xf32, #tpu.memory_space<vmem>>, %arg6: memref<128x256xbf16, #tpu.memory_space<vmem>>, %arg7: memref<1x256xf32, #tpu.memory_space<vmem>>, %arg8: memref<128x256xf32, #tpu.memory_space<vmem>>, %arg9: memref<256x128xf32, #tpu.memory_space<vmem>>, %arg10: memref<1x128xf32, #tpu.memory_space<vmem>>, %arg11: memref<1x128xf32, #tpu.memory_space<vmem>>, %arg12: memref<1x128xf32, #tpu.memory_space<vmem>>, %arg13: memref<1x128xf32, #tpu.memory_space<vmem>>) attributes {dimension_semantics = [#tpu.dimension_semantics<arbitrary>, #tpu.dimension_semantics<arbitrary>], iteration_bounds = array<i64: 2, 2>, scalar_prefetch = 0 : i64, scratch_operands = 5 : i64, tpu.core_type = #tpu.core_type<tc>, window_params = [{transform_indices = @transform_0, window_bounds = array<i64: 128, 256>}, {pipeline_mode = #tpu.pipeline_mode<synchronous>, transform_indices = @transform_1, window_bounds = array<i64: 256, 128>}, {pipeline_mode = #tpu.pipeline_mode<synchronous>, transform_indices = @transform_2, window_bounds = array<i64: 1, 128>}, {pipeline_mode = #tpu.pipeline_mode<synchronous>, transform_indices = @transform_3, window_bounds = array<i64: 1, 128>}, {pipeline_mode = #tpu.pipeline_mode<synchronous>, transform_indices = @transform_4, window_bounds = array<i64: 128, 256>}, {pipeline_mode = #tpu.pipeline_mode<synchronous>, transform_indices = @transform_5, window_bounds = array<i64: 1, 256>}, {transform_indices = @transform_6, window_bounds = array<i64: 128, 256>}]} {
    %c128_i32 = arith.constant 128 : i32
    %0 = arith.muli %arg1, %c128_i32 : i32
    %1 = tpu.assume_multiple %0, 128 : i32
    %c0_i32 = arith.constant 0 : i32
    %2 = arith.cmpi eq, %arg0, %c0_i32 : i32
    %3 = arith.extui %2 : i1 to i32
    %c0_i32_0 = arith.constant 0 : i32
    %4 = arith.cmpi ne, %3, %c0_i32_0 : i32
    scf.if %4 {
      %c0_i32_2 = arith.constant 0 : i32
      %8 = arith.cmpi eq, %arg1, %c0_i32_2 : i32
      %9 = arith.extui %8 : i1 to i32
      %c0_i32_3 = arith.constant 0 : i32
      %10 = arith.cmpi ne, %9, %c0_i32_3 : i32
      scf.if %10 {
        %cst_18 = arith.constant 0.000000e+00 : f32
        %28 = vector.broadcast %cst_18 : f32 to vector<1x128xf32>
        %c0_19 = arith.constant 0 : index
        %c0_20 = arith.constant 0 : index
        %29 = vector.load %arg10[%c0_19, %c0_20] : memref<1x128xf32, #tpu.memory_space<vmem>>, vector<1x128xf32>
        tpu.vector_store %arg10[%c0_19, %c0_20], %28 {strides = array<i32>} : memref<1x128xf32, #tpu.memory_space<vmem>>, vector<1x128xf32>,
        %cst_21 = arith.constant 0.000000e+00 : f32
        %30 = vector.broadcast %cst_21 : f32 to vector<1x128xf32>
        %c0_22 = arith.constant 0 : index
        %c0_23 = arith.constant 0 : index
        %31 = vector.load %arg11[%c0_22, %c0_23] : memref<1x128xf32, #tpu.memory_space<vmem>>, vector<1x128xf32>
        tpu.vector_store %arg11[%c0_22, %c0_23], %30 {strides = array<i32>} : memref<1x128xf32, #tpu.memory_space<vmem>>, vector<1x128xf32>,
      } else {
      }
      %c0 = arith.constant 0 : index
      %c0_4 = arith.constant 0 : index
      %11 = vector.load %arg2[%c0, %c0_4] : memref<128x256xf32, #tpu.memory_space<vmem>>, vector<128x256xf32>
      %12 = arith.truncf %11 : vector<128x256xf32> to vector<128x256xbf16>
      %c0_5 = arith.constant 0 : index
      %c0_6 = arith.constant 0 : index
      %13 = vector.load %arg3[%c0_5, %c0_6] : memref<256x128xbf16, #tpu.memory_space<vmem>>, vector<256x128xbf16>
      %cst = arith.constant dense<0.000000e+00> : vector<128x128xf32>
      %14 = tpu.matmul %12, %13, %cst {dimension_numbers = #tpu.dot_dimension_numbers<[1], [0], [0], [1], [0, 0, 1, 1], [], []>} : vector<128x256xbf16>, vector<256x128xbf16>, vector<128x128xf32> -> vector<128x128xf32>
      %c0_7 = arith.constant 0 : index
      %c0_8 = arith.constant 0 : index
      %15 = vector.load %arg10[%c0_7, %c0_8] : memref<1x128xf32, #tpu.memory_space<vmem>>, vector<1x128xf32>
      %cst_9 = arith.constant dense<0.000000e+00> : vector<128xf32>
      %16 = vector.multi_reduction <add>, %14, %cst_9 [0] : vector<128x128xf32> to vector<128xf32>
      %17 = vector.shape_cast %16 : vector<128xf32> to vector<1x128xf32>
      %18 = arith.addf %15, %17 : vector<1x128xf32>
      %c0_10 = arith.constant 0 : index
      %c0_11 = arith.constant 0 : index
      %19 = vector.load %arg10[%c0_10, %c0_11] : memref<1x128xf32, #tpu.memory_space<vmem>>, vector<1x128xf32>
      tpu.vector_store %arg10[%c0_10, %c0_11], %18 {strides = array<i32>} : memref<1x128xf32, #tpu.memory_space<vmem>>, vector<1x128xf32>,
      %c0_12 = arith.constant 0 : index
      %c0_13 = arith.constant 0 : index
      %20 = vector.load %arg11[%c0_12, %c0_13] : memref<1x128xf32, #tpu.memory_space<vmem>>, vector<1x128xf32>
      %21 = arith.mulf %14, %14 : vector<128x128xf32>
      %cst_14 = arith.constant dense<0.000000e+00> : vector<128xf32>
      %22 = vector.multi_reduction <add>, %21, %cst_14 [0] : vector<128x128xf32> to vector<128xf32>
      %23 = vector.shape_cast %22 : vector<128xf32> to vector<1x128xf32>
      %24 = arith.addf %20, %23 : vector<1x128xf32>
      %c0_15 = arith.constant 0 : index
      %c0_16 = arith.constant 0 : index
      %25 = vector.load %arg11[%c0_15, %c0_16] : memref<1x128xf32, #tpu.memory_space<vmem>>, vector<1x128xf32>
      tpu.vector_store %arg11[%c0_15, %c0_16], %24 {strides = array<i32>} : memref<1x128xf32, #tpu.memory_space<vmem>>, vector<1x128xf32>,
      %26 = arith.index_cast %1 : i32 to index
      %c0_17 = arith.constant 0 : index
      %27 = vector.load %arg9[%26, %c0_17] : memref<256x128xf32, #tpu.memory_space<vmem>>, vector<128x128xf32>
      tpu.vector_store %arg9[%26, %c0_17], %14 {strides = array<i32>} : memref<256x128xf32, #tpu.memory_space<vmem>>, vector<128x128xf32>,
    } else {
    }
    %c1_i32 = arith.constant 1 : i32
    %5 = arith.cmpi eq, %arg0, %c1_i32 : i32
    %6 = arith.extui %5 : i1 to i32
    %c0_i32_1 = arith.constant 0 : i32
    %7 = arith.cmpi ne, %6, %c0_i32_1 : i32
    scf.if %7 {
      %c0_i32_2 = arith.constant 0 : i32
      %8 = arith.cmpi eq, %arg1, %c0_i32_2 : i32
      %9 = arith.extui %8 : i1 to i32
      %c0_i32_3 = arith.constant 0 : i32
      %10 = arith.cmpi ne, %9, %c0_i32_3 : i32
      scf.if %10 {
        %c0_15 = arith.constant 0 : index
        %c0_16 = arith.constant 0 : index
        %28 = vector.load %arg10[%c0_15, %c0_16] : memref<1x128xf32, #tpu.memory_space<vmem>>, vector<1x128xf32>
        %cst_17 = arith.constant 3.906250e-03 : f32
        %29 = vector.broadcast %cst_17 : f32 to vector<1x128xf32>
        %30 = arith.mulf %28, %29 : vector<1x128xf32>
        %c0_18 = arith.constant 0 : index
        %c0_19 = arith.constant 0 : index
        %31 = vector.load %arg11[%c0_18, %c0_19] : memref<1x128xf32, #tpu.memory_space<vmem>>, vector<1x128xf32>
        %cst_20 = arith.constant 3.906250e-03 : f32
        %32 = vector.broadcast %cst_20 : f32 to vector<1x128xf32>
        %33 = arith.mulf %31, %32 : vector<1x128xf32>
        %34 = arith.mulf %30, %30 : vector<1x128xf32>
        %35 = arith.subf %33, %34 : vector<1x128xf32>
        %cst_21 = arith.constant 0.000000e+00 : f32
        %36 = vector.broadcast %cst_21 : f32 to vector<1x128xf32>
        %37 = arith.maximumf %35, %36 : vector<1x128xf32>
        %c0_22 = arith.constant 0 : index
        %c0_23 = arith.constant 0 : index
        %38 = vector.load %arg4[%c0_22, %c0_23] : memref<1x128xf32, #tpu.memory_space<vmem>>, vector<1x128xf32>
        %cst_24 = arith.constant 9.99999974E-6 : f32
        %39 = vector.broadcast %cst_24 : f32 to vector<1x128xf32>
        %40 = arith.addf %37, %39 : vector<1x128xf32>
        %41 = math.rsqrt %40 : vector<1x128xf32>
        %42 = arith.mulf %38, %41 : vector<1x128xf32>
        %c0_25 = arith.constant 0 : index
        %c0_26 = arith.constant 0 : index
        %43 = vector.load %arg12[%c0_25, %c0_26] : memref<1x128xf32, #tpu.memory_space<vmem>>, vector<1x128xf32>
        tpu.vector_store %arg12[%c0_25, %c0_26], %42 {strides = array<i32>} : memref<1x128xf32, #tpu.memory_space<vmem>>, vector<1x128xf32>,
        %c0_27 = arith.constant 0 : index
        %c0_28 = arith.constant 0 : index
        %44 = vector.load %arg5[%c0_27, %c0_28] : memref<1x128xf32, #tpu.memory_space<vmem>>, vector<1x128xf32>
        %45 = arith.mulf %30, %42 : vector<1x128xf32>
        %46 = arith.subf %44, %45 : vector<1x128xf32>
        %c0_29 = arith.constant 0 : index
        %c0_30 = arith.constant 0 : index
        %47 = vector.load %arg13[%c0_29, %c0_30] : memref<1x128xf32, #tpu.memory_space<vmem>>, vector<1x128xf32>
        tpu.vector_store %arg13[%c0_29, %c0_30], %46 {strides = array<i32>} : memref<1x128xf32, #tpu.memory_space<vmem>>, vector<1x128xf32>,
      } else {
      }
      %11 = arith.index_cast %1 : i32 to index
      %c0 = arith.constant 0 : index
      %12 = vector.load %arg9[%11, %c0] : memref<256x128xf32, #tpu.memory_space<vmem>>, vector<128x128xf32>
      %c0_4 = arith.constant 0 : index
      %c0_5 = arith.constant 0 : index
      %13 = vector.load %arg12[%c0_4, %c0_5] : memref<1x128xf32, #tpu.memory_space<vmem>>, vector<1x128xf32>
      %14 = vector.broadcast %13 : vector<1x128xf32> to vector<128x128xf32>
      %15 = arith.mulf %12, %14 : vector<128x128xf32>
      %c0_6 = arith.constant 0 : index
      %c0_7 = arith.constant 0 : index
      %16 = vector.load %arg13[%c0_6, %c0_7] : memref<1x128xf32, #tpu.memory_space<vmem>>, vector<1x128xf32>
      %17 = vector.broadcast %16 : vector<1x128xf32> to vector<128x128xf32>
      %18 = arith.addf %15, %17 : vector<128x128xf32>
      %cst = arith.constant 0.000000e+00 : f32
      %19 = vector.broadcast %cst : f32 to vector<128x128xf32>
      %20 = arith.maximumf %18, %19 : vector<128x128xf32>
      %21 = arith.truncf %20 : vector<128x128xf32> to vector<128x128xbf16>
      %c0_8 = arith.constant 0 : index
      %c0_9 = arith.constant 0 : index
      %22 = vector.load %arg6[%c0_8, %c0_9] : memref<128x256xbf16, #tpu.memory_space<vmem>>, vector<128x256xbf16>
      %cst_10 = arith.constant dense<0.000000e+00> : vector<128x256xf32>
      %23 = tpu.matmul %21, %22, %cst_10 {dimension_numbers = #tpu.dot_dimension_numbers<[1], [0], [0], [1], [0, 0, 1, 1], [], []>} : vector<128x128xbf16>, vector<128x256xbf16>, vector<128x256xf32> -> vector<128x256xf32>
      %c0_11 = arith.constant 0 : index
      %c0_12 = arith.constant 0 : index
      %24 = vector.load %arg7[%c0_11, %c0_12] : memref<1x256xf32, #tpu.memory_space<vmem>>, vector<1x256xf32>
      %25 = vector.broadcast %24 : vector<1x256xf32> to vector<128x256xf32>
      %26 = arith.addf %23, %25 : vector<128x256xf32>
      %c0_13 = arith.constant 0 : index
      %c0_14 = arith.constant 0 : index
      %27 = vector.load %arg8[%c0_13, %c0_14] : memref<128x256xf32, #tpu.memory_space<vmem>>, vector<128x256xf32>
      tpu.vector_store %arg8[%c0_13, %c0_14], %26 {strides = array<i32>} : memref<128x256xf32, #tpu.memory_space<vmem>>, vector<128x256xf32>,
    } else {
    }
    return
  }
  func.func @transform_0(%arg0: i32, %arg1: i32) -> (i32, i32) {
    %c1_i32 = arith.constant 1 : i32
    %0 = arith.subi %c1_i32, %arg0 : i32
    %1 = arith.muli %arg1, %0 : i32
    %c1_i32_0 = arith.constant 1 : i32
    %2 = arith.muli %c1_i32_0, %arg0 : i32
    %3 = arith.addi %1, %2 : i32
    %c0_i32 = arith.constant 0 : i32
    %c0_i32_1 = arith.constant 0 : i32
    return %3, %c0_i32 : i32, i32
  }
  func.func @transform_1(%arg0: i32, %arg1: i32) -> (i32, i32) {
    %c0_i32 = arith.constant 0 : i32
    %c0_i32_0 = arith.constant 0 : i32
    %c0_i32_1 = arith.constant 0 : i32
    return %c0_i32, %c0_i32_0 : i32, i32
  }
  func.func @transform_2(%arg0: i32, %arg1: i32) -> (i32, i32) {
    %c0_i32 = arith.constant 0 : i32
    %c0_i32_0 = arith.constant 0 : i32
    %c0_i32_1 = arith.constant 0 : i32
    return %c0_i32, %c0_i32_0 : i32, i32
  }
  func.func @transform_3(%arg0: i32, %arg1: i32) -> (i32, i32) {
    %c0_i32 = arith.constant 0 : i32
    %c0_i32_0 = arith.constant 0 : i32
    %c0_i32_1 = arith.constant 0 : i32
    return %c0_i32, %c0_i32_0 : i32, i32
  }
  func.func @transform_4(%arg0: i32, %arg1: i32) -> (i32, i32) {
    %c0_i32 = arith.constant 0 : i32
    %c0_i32_0 = arith.constant 0 : i32
    %c0_i32_1 = arith.constant 0 : i32
    return %c0_i32, %c0_i32_0 : i32, i32
  }
  func.func @transform_5(%arg0: i32, %arg1: i32) -> (i32, i32) {
    %c0_i32 = arith.constant 0 : i32
    %c0_i32_0 = arith.constant 0 : i32
    %c0_i32_1 = arith.constant 0 : i32
    return %c0_i32, %c0_i32_0 : i32, i32
  }
  func.func @transform_6(%arg0: i32, %arg1: i32) -> (i32, i32) {
    %0 = arith.muli %arg1, %arg0 : i32
    %c0_i32 = arith.constant 0 : i32
    %c0_i32_0 = arith.constant 0 : i32
    return %0, %c0_i32 : i32, i32
  }
}

</mosaic_0001>

<llo_original>
// kernel: tpu_custom_call.1
$region0: #{tpu_custom_call.1}
  #allocation0 [shape = 'u32[]', space=smem, size = 0x4, offset = 0x4, fixed_abs, tag = 'smem constant byte address 0x4 - core index']
  #allocation1 [shape = 'u32[144,128]{1,0:T(1,128)}', space=vmem, size = 0x12000, scoped, tag = 'internal scratch']
  #allocation2 [shape = 'f32[256,128]{1,0:T(8,128)}', space=vmem, size = 0x20000, scoped, tag = 'scratch operand']
  #allocation3 [shape = 'f32[1,128]{1,0:T(1,128)}', space=vmem, size = 0x200, scoped, tag = 'scratch operand']
  #allocation4 [shape = 'f32[1,128]{1,0:T(1,128)}', space=vmem, size = 0x200, scoped, tag = 'scratch operand']
  #allocation5 [shape = 'f32[1,128]{1,0:T(1,128)}', space=vmem, size = 0x200, scoped, tag = 'scratch operand']
  #allocation6 [shape = 'f32[1,128]{1,0:T(1,128)}', space=vmem, size = 0x200, scoped, tag = 'scratch operand']
  %s0 = inlined_call_operand.hbm [shape: f32[256,256], index: 0, kind: input, shape index: {}]
  %s1 = inlined_call_operand.hbm [shape: bf16[256,128], index: 1, kind: input, shape index: {}]
  %s2 = inlined_call_operand.vmem [shape: f32[1,128], index: 2, kind: input, shape index: {}]
  %s3 = inlined_call_operand.vmem [shape: f32[1,128], index: 3, kind: input, shape index: {}]
  %s4 = inlined_call_operand.hbm [shape: bf16[128,256], index: 4, kind: input, shape index: {}]
  %s5 = inlined_call_operand.vmem [shape: f32[1,256], index: 5, kind: input, shape index: {}]
  %s6 = inlined_call_operand.hbm [shape: f32[256,256], index: 6, kind: output, shape index: {}]
  %s7 = sld [smem:[#allocation0]]
  $region85: #{tpu_custom_call.1} parent=0
    _
  %s9 = ssub.s32 1, %s7
  %s10 = scalar_select 0, %s9, %s7
  $region1: #{tpu_custom_call.1} parent=0
    #allocation7 [shape = 'u8[262144]{0}', space=vmem, size = 0x40000, scoped, tag = 'input window, operand 0']
    #allocation8 [shape = 's32[2]{0}', space=sflag, size = 0x8, scoped, tag = 'scoped memory for tpu_custom_call.1']
    #allocation9 [shape = 's32[2]{0}', space=sflag, size = 0x8, scoped, tag = 'scoped memory for tpu_custom_call.1']
    #allocation10 [shape = 'u8[65536]{0}', space=vmem, size = 0x10000, scoped, tag = 'input window, operand 1, single buffered']
    #allocation11 [shape = 's32[1]{0}', space=sflag, size = 0x4, scoped, tag = 'scoped memory for tpu_custom_call.1']
    #allocation12 [shape = 'u8[65536]{0}', space=vmem, size = 0x10000, scoped, tag = 'input window, operand 4, single buffered']
    #allocation13 [shape = 'u8[262144]{0}', space=vmem, size = 0x40000, scoped, tag = 'output window, operand 0']
    %11 = vsyncpa [#allocation8], 0
    %s12 = scalar_lea.sflag [#allocation8], 1
    %13 = vsyncpa %s12, 0
    %14 = vsyncpa [#allocation11], 0
    %15 = vsyncpa [#allocation9], 0
    %s16 = scalar_lea.sflag [#allocation9], 1
    %17 = vsyncpa %s16, 0
    loop: start=0, step=1, limit=6
    $region2: #{tpu_custom_call.1} parent=1 // loop_pre_header
      _
    $region3: #{tpu_custom_call.1} parent=1 // loop_header
      %s19 = sphi 0, %s23
      %p20 = scmp.ge.s32.totalorder %s19, 6
      %s26 = sphi 0, %s38
      %s27 = sphi 0, %s34
      %s28 = sphi 0, %s26
      %s29 = sphi 0, %s27
      %s30 = sphi 0, %s28
      %s31 = sphi 0, %s29
      %s47 = sphi 0, %s49
      %s50 = sphi 0, %s47
      %s51 = sphi 0, %s50
      %s67 = sphi 0, %s51
      %s71 = sphi 0, %s71
      %s73 = sphi 0, %s71
      %s74 = sphi 0, %s73
      %s88 = sphi 0, %s74
      %s92 = sphi 0, %s92
      %s94 = sphi 0, %s92
      %s95 = sphi 0, %s94
      %s109 = sphi 0, %s95
      %s113 = sphi 0, %s113
      %s115 = sphi 0, %s113
      %s116 = sphi 0, %s115
      %s130 = sphi 0, %s116
      %s134 = sphi 0, %s134
      %s136 = sphi 0, %s134
      %s137 = sphi 0, %s136
      %s151 = sphi 0, %s137
      %s155 = sphi 0, %s155
      %s157 = sphi 0, %s155
      %s158 = sphi 0, %s157
      %s172 = sphi 0, %s158
      %s180 = sphi 0, %s182
      %s183 = sphi 0, %s180
      %s184 = sphi 0, %s183
      %s200 = sphi 0, %s184
    $region4: #{tpu_custom_call.1} parent=1 // loop_header_branch
      %22 = sbr.rel (%p20) target = $region8
    $region5: #{tpu_custom_call.1} parent=1 // loop_body
      %s24 = ssub.s32 %s19, 1
      %s25 = ssub.s32 %s19, 2
      %s32 = sadd.s32 1, %s27
      %p33 = scmp.ge.s32.totalorder %s32, 2
      %s34 = scalar_select %p33, 0, %s32
      %s35 = sadd.s32 1, %s26
      %s36 = scalar_select %p33, %s35, %s26
      %p37 = scmp.ge.s32.totalorder %s36, 2
      %s38 = scalar_select %p37, 0, %s36
      %s39 = ssub.s32 1, %s26
      %s40 = smul.u32 %s27, %s39
      %s41 = sadd.s32 %s40, %s26
      %s42 = ssub.s32 1, %s38
      %s43 = smul.u32 %s34, %s42
      %s44 = sadd.s32 %s43, %s38
      %s45 = ssub.s32 %s41, %s44
      %p46 = scmp.eq.s32.totalorder %s45, 0
      %s48 = sadd.s32 %s47, 1
      %s49 = scalar_select %p46, %s47, %s48
      %p52 = pneg %p46
      %p53 = scmp.eq.s32.totalorder %s19, 3
      %p54 = por %p52, %p53
      %p55 = scmp.ne.s32.totalorder %s47, %s50
      %p56 = scmp.eq.s32.totalorder %s19, 0
      %p57 = por %p55, %p56
      %p58 = scmp.ne.s32.totalorder %s47, %s50
      %p59 = scmp.eq.s32.totalorder %s24, 3
      %p60 = por %p58, %p59
      %p61 = scmp.ne.s32.totalorder %s50, %s51
      %p62 = scmp.eq.s32.totalorder %s24, 0
      %p63 = por %p61, %p62
      %p64 = scmp.ne.s32.totalorder %s50, %s51
      %p65 = scmp.eq.s32.totalorder %s25, 3
      %p66 = por %p64, %p65
      %p68 = scmp.ne.s32.totalorder %s51, %s67
      %p69 = scmp.eq.s32.totalorder %s25, 0
      %p70 = por %p68, %p69
      %s72 = sadd.s32 %s71, 1
      %p75 = scmp.eq.s32.totalorder %s19, 3
      %p76 = scmp.ne.s32.totalorder %s71, %s73
      %p77 = scmp.eq.s32.totalorder %s19, 0
      %p78 = por %p76, %p77
      %p79 = scmp.ne.s32.totalorder %s71, %s73
      %p80 = scmp.eq.s32.totalorder %s24, 3
      %p81 = por %p79, %p80
      %p82 = scmp.ne.s32.totalorder %s73, %s74
      %p83 = scmp.eq.s32.totalorder %s24, 0
      %p84 = por %p82, %p83
      %p85 = scmp.ne.s32.totalorder %s73, %s74
      %p86 = scmp.eq.s32.totalorder %s25, 3
      %p87 = por %p85, %p86
      %p89 = scmp.ne.s32.totalorder %s74, %s88
      %p90 = scmp.eq.s32.totalorder %s25, 0
      %p91 = por %p89, %p90
      %s93 = sadd.s32 %s92, 1
      %p96 = scmp.eq.s32.totalorder %s19, 3
      %p97 = scmp.ne.s32.totalorder %s92, %s94
      %p98 = scmp.eq.s32.totalorder %s19, 0
      %p99 = por %p97, %p98
      %p100 = scmp.ne.s32.totalorder %s92, %s94
      %p101 = scmp.eq.s32.totalorder %s24, 3
      %p102 = por %p100, %p101
      %p103 = scmp.ne.s32.totalorder %s94, %s95
      %p104 = scmp.eq.s32.totalorder %s24, 0
      %p105 = por %p103, %p104
      %p106 = scmp.ne.s32.totalorder %s94, %s95
      %p107 = scmp.eq.s32.totalorder %s25, 3
      %p108 = por %p106, %p107
      %p110 = scmp.ne.s32.totalorder %s95, %s109
      %p111 = scmp.eq.s32.totalorder %s25, 0
      %p112 = por %p110, %p111
      %s114 = sadd.s32 %s113, 1
      %p117 = scmp.eq.s32.totalorder %s19, 3
      %p118 = scmp.ne.s32.totalorder %s113, %s115
      %p119 = scmp.eq.s32.totalorder %s19, 0
      %p120 = por %p118, %p119
      %p121 = scmp.ne.s32.totalorder %s113, %s115
      %p122 = scmp.eq.s32.totalorder %s24, 3
      %p123 = por %p121, %p122
      %p124 = scmp.ne.s32.totalorder %s115, %s116
      %p125 = scmp.eq.s32.totalorder %s24, 0
      %p126 = por %p124, %p125
      %p127 = scmp.ne.s32.totalorder %s115, %s116
      %p128 = scmp.eq.s32.totalorder %s25, 3
      %p129 = por %p127, %p128
      %p131 = scmp.ne.s32.totalorder %s116, %s130
      %p132 = scmp.eq.s32.totalorder %s25, 0
      %p133 = por %p131, %p132
      %s135 = sadd.s32 %s134, 1
      %p138 = scmp.eq.s32.totalorder %s19, 3
      %p139 = scmp.ne.s32.totalorder %s134, %s136
      %p140 = scmp.eq.s32.totalorder %s19, 0
      %p141 = por %p139, %p140
      %p142 = scmp.ne.s32.totalorder %s134, %s136
      %p143 = scmp.eq.s32.totalorder %s24, 3
      %p144 = por %p142, %p143
      %p145 = scmp.ne.s32.totalorder %s136, %s137
      %p146 = scmp.eq.s32.totalorder %s24, 0
      %p147 = por %p145, %p146
      %p148 = scmp.ne.s32.totalorder %s136, %s137
      %p149 = scmp.eq.s32.totalorder %s25, 3
      %p150 = por %p148, %p149
      %p152 = scmp.ne.s32.totalorder %s137, %s151
      %p153 = scmp.eq.s32.totalorder %s25, 0
      %p154 = por %p152, %p153
      %s156 = sadd.s32 %s155, 1
      %p159 = scmp.eq.s32.totalorder %s19, 3
      %p160 = scmp.ne.s32.totalorder %s155, %s157
      %p161 = scmp.eq.s32.totalorder %s19, 0
      %p162 = por %p160, %p161
      %p163 = scmp.ne.s32.totalorder %s155, %s157
      %p164 = scmp.eq.s32.totalorder %s24, 3
      %p165 = por %p163, %p164
      %p166 = scmp.ne.s32.totalorder %s157, %s158
      %p167 = scmp.eq.s32.totalorder %s24, 0
      %p168 = por %p166, %p167
      %p169 = scmp.ne.s32.totalorder %s157, %s158
      %p170 = scmp.eq.s32.totalorder %s25, 3
      %p171 = por %p169, %p170
      %p173 = scmp.ne.s32.totalorder %s158, %s172
      %p174 = scmp.eq.s32.totalorder %s25, 0
      %p175 = por %p173, %p174
      %s176 = smul.u32 %s27, %s26
      %s177 = smul.u32 %s34, %s38
      %s178 = ssub.s32 %s176, %s177
      %p179 = scmp.eq.s32.totalorder %s178, 0
      %s181 = sadd.s32 %s180, 1
      %s182 = scalar_select %p179, %s180, %s181
      %p185 = pneg %p179
      %p186 = scmp.eq.s32.totalorder %s19, 3
      %p187 = por %p185, %p186
      %p188 = scmp.ne.s32.totalorder %s180, %s183
      %p189 = scmp.eq.s32.totalorder %s19, 0
      %p190 = por %p188, %p189
      %p191 = scmp.ne.s32.totalorder %s180, %s183
      %p192 = scmp.eq.s32.totalorder %s24, 3
      %p193 = por %p191, %p192
      %p194 = scmp.ne.s32.totalorder %s183, %s184
      %p195 = scmp.eq.s32.totalorder %s24, 0
      %p196 = por %p194, %p195
      %p197 = scmp.ne.s32.totalorder %s183, %s184
      %p198 = scmp.eq.s32.totalorder %s25, 3
      %p199 = por %p197, %p198
      %p201 = scmp.ne.s32.totalorder %s184, %s200
      %p202 = scmp.eq.s32.totalorder %s25, 0
      %p203 = por %p201, %p202
      %p204 = scmp.le.s32.totalorder 1, %s19
      %p205 = scmp.lt.s32.totalorder %s19, 5
      %p206 = pnand %p204, %p205
      %p207 = pneg %p206
      // Predicated region
      $region9: #{tpu_custom_call.1} parent=5 // pred_check
        _
      $region10: #{tpu_custom_call.1} parent=5 // pred_check_branch
        %209 = sbr.rel (%p206) target = $region12
      $region11: #{tpu_custom_call.1} parent=5 // pred_region
        %s210 = ssub.s32 %s19, 1
        // Predicated region
        $region13: #{tpu_custom_call.1} parent=11 // pred_check
          %p211 = pneg %p84
        $region14: #{tpu_custom_call.1} parent=11 // pred_check_branch
          %213 = sbr.rel (%p211) target = $region16
        $region15: #{tpu_custom_call.1} parent=11 // pred_region
          %s215 = ssub.s32 2048, 2048
          %216 = vsyncadd [#allocation11], %s215
          %s217 = sshll.u32 [#allocation10], 4
          %s218 = int_to_ptr.vmem [resolvable:$true] %s217
          %223 = dma.hbm_to_vmem [thread:$0]  %s1, 2048, %s218, [#allocation11], 64, 64, 4
        $region16: #{tpu_custom_call.1} parent=11 // pred_fallthru
          _
        // Predicated region
        $region17: #{tpu_custom_call.1} parent=11 // pred_check
          %p224 = pneg %p105
        $region18: #{tpu_custom_call.1} parent=11 // pred_check_branch
          %226 = sbr.rel (%p224) target = $region20
        $region19: #{tpu_custom_call.1} parent=11 // pred_region
          _
        $region20: #{tpu_custom_call.1} parent=11 // pred_fallthru
          _
        // Predicated region
        $region21: #{tpu_custom_call.1} parent=11 // pred_check
          %p227 = pneg %p126
        $region22: #{tpu_custom_call.1} parent=11 // pred_check_branch
          %229 = sbr.rel (%p227) target = $region24
        $region23: #{tpu_custom_call.1} parent=11 // pred_region
          _
        $region24: #{tpu_custom_call.1} parent=11 // pred_fallthru
          _
        // Predicated region
        $region25: #{tpu_custom_call.1} parent=11 // pred_check
          %p230 = pneg %p147
        $region26: #{tpu_custom_call.1} parent=11 // pred_check_branch
          %232 = sbr.rel (%p230) target = $region28
        $region27: #{tpu_custom_call.1} parent=11 // pred_region
          %s234 = ssub.s32 2048, 2048
          %235 = vsyncadd [#allocation11], %s234
          %s236 = sshll.u32 [#allocation12], 4
          %s237 = int_to_ptr.vmem [resolvable:$true] %s236
          %242 = dma.hbm_to_vmem [thread:$0]  %s4, 2048, %s237, [#allocation11], 128, 128, 8
        $region28: #{tpu_custom_call.1} parent=11 // pred_fallthru
          _
        // Predicated region
        $region29: #{tpu_custom_call.1} parent=11 // pred_check
          %p243 = pneg %p168
        $region30: #{tpu_custom_call.1} parent=11 // pred_check_branch
          %245 = sbr.rel (%p243) target = $region32
        $region31: #{tpu_custom_call.1} parent=11 // pred_region
          _
        $region32: #{tpu_custom_call.1} parent=11 // pred_fallthru
          _
      $region12: #{tpu_custom_call.1} parent=5 // pred_fallthru
        _
      %p246 = scmp.lt.s32.totalorder %s19, 4
      // Predicated region
      $region33: #{tpu_custom_call.1} parent=5 // pred_check
        %p247 = pneg %p246
      $region34: #{tpu_custom_call.1} parent=5 // pred_check_branch
        %249 = sbr.rel (%p247) target = $region36
      $region35: #{tpu_custom_call.1} parent=5 // pred_region
        // Predicated region
        $region37: #{tpu_custom_call.1} parent=35 // pred_check
          %p250 = pneg %p57
        $region38: #{tpu_custom_call.1} parent=35 // pred_check_branch
          %252 = sbr.rel (%p250) target = $region40
        $region39: #{tpu_custom_call.1} parent=35 // pred_region
          %s253 = sand.u32 %s47, 1
          %s254 = scalar_lea.sflag [#allocation8], %s253
          %s255 = sand.u32 %s47, 1
          %s256 = smul.addr %s255, 256
          %s257 = scalar_lea.vmem [#allocation7], %s256
          %s258 = ssub.s32 1, %s26
          %s259 = smul.u32 %s27, %s258
          %s260 = sadd.s32 %s259, %s26
          %s261 = smul.u32 16, %s260
          %s263 = ssub.s32 4096, 4096
          %264 = vsyncadd %s254, %s263
          %s265 = smul.addr %s261, 2
          %s266 = smul.addr %s265, 128
          %s267 = scalar_lea.hbm %s0, %s266
          %s268 = sshll.u32 %s257, 4
          %s269 = int_to_ptr.vmem [resolvable:$true] %s268
          %274 = dma.hbm_to_vmem [thread:$0]  %s267, 4096, %s269, %s254, 256, 256, 16
        $region40: #{tpu_custom_call.1} parent=35 // pred_fallthru
          _
      $region36: #{tpu_custom_call.1} parent=5 // pred_fallthru
        _
      %p275 = scmp.le.s32.totalorder 1, %s19
      %p276 = scmp.lt.s32.totalorder %s19, 5
      %p277 = pnand %p275, %p276
      %p278 = pneg %p277
      // Predicated region
      $region41: #{tpu_custom_call.1} parent=5 // pred_check
        _
      $region42: #{tpu_custom_call.1} parent=5 // pred_check_branch
        %280 = sbr.rel (%p277) target = $region44
      $region43: #{tpu_custom_call.1} parent=5 // pred_region
        %s281 = ssub.s32 %s19, 1
        %s282 = sand.u32 %s50, 1
        %s283 = scalar_lea.sflag [#allocation8], %s282
        %s284 = sand.u32 %s50, 1
        %s285 = smul.addr %s284, 256
        %s286 = scalar_lea.vmem [#allocation7], %s285
        // Predicated region
        $region45: #{tpu_custom_call.1} parent=43 // pred_check
          %p287 = pneg %p63
        $region46: #{tpu_custom_call.1} parent=43 // pred_check_branch
          %289 = sbr.rel (%p287) target = $region48
        $region47: #{tpu_custom_call.1} parent=43 // pred_region
          %290 = dma.done %s283, 4096
        $region48: #{tpu_custom_call.1} parent=43 // pred_fallthru
          _
        // Predicated region
        $region49: #{tpu_custom_call.1} parent=43 // pred_check
          %p291 = pneg %p84
        $region50: #{tpu_custom_call.1} parent=43 // pred_check_branch
          %293 = sbr.rel (%p291) target = $region52
        $region51: #{tpu_custom_call.1} parent=43 // pred_region
          %294 = dma.done [#allocation11], 2048
        $region52: #{tpu_custom_call.1} parent=43 // pred_fallthru
          _
        // Predicated region
        $region53: #{tpu_custom_call.1} parent=43 // pred_check
          %p295 = pneg %p147
        $region54: #{tpu_custom_call.1} parent=43 // pred_check_branch
          %297 = sbr.rel (%p295) target = $region56
        $region55: #{tpu_custom_call.1} parent=43 // pred_region
          %298 = dma.done [#allocation11], 2048
        $region56: #{tpu_custom_call.1} parent=43 // pred_fallthru
          _
        %s299 = sand.u32 %s50, 1
        %s300 = scalar_lea.sflag [#allocation8], %s299
        %s301 = sand.u32 %s50, 1
        %s302 = smul.addr %s301, 256
        %s303 = scalar_lea.vmem [#allocation7], %s302
        %p304 = pneg %p63
        %p305 = pneg %p60
        %p306 = pneg %p84
        %p307 = pneg %p81
        %p308 = pneg %p105
        %p309 = pneg %p102
        %p310 = pneg %p126
        %p311 = pneg %p123
        %p312 = pneg %p147
        %p313 = pneg %p144
        %p314 = pneg %p168
        %p315 = pneg %p165
        %p316 = pneg %p196
        %p317 = pneg %p193
        %s318 = sand.u32 %s183, 1
        %s319 = scalar_lea.sflag [#allocation9], %s318
        %s320 = sand.u32 %s183, 1
        %s321 = smul.addr %s320, 256
        %s322 = scalar_lea.vmem [#allocation13], %s321
        %s323 = ssub.s32 1, %s28
        %s324 = smul.u32 %s29, %s323
        %s325 = sadd.s32 %s324, %s28
        %s326 = smul.u32 16, %s325
        %s327 = smul.u32 %s29, %s28
        %s328 = smul.u32 16, %s327
        %s330 = smul.u32 %s29, 128
        %p331 = scmp.eq.s32.totalorder %s28, 0
        // Predicated region
        $region57: #{tpu_custom_call.1} parent=43 // pred_check
          %p332 = pneg %p331
        $region58: #{tpu_custom_call.1} parent=43 // pred_check_branch
          %334 = sbr.rel (%p332) target = $region60
        $region59: #{tpu_custom_call.1} parent=43 // pred_region
          %p335 = scmp.eq.s32.totalorder %s29, 0
          // Predicated region
          $region61: #{tpu_custom_call.1} parent=59 // pred_check
            %p336 = pneg %p335
          $region62: #{tpu_custom_call.1} parent=59 // pred_check_branch
            %338 = sbr.rel (%p336) target = $region64
          $region63: #{tpu_custom_call.1} parent=59 // pred_region
            %339 = vst [vmem:[#allocation3] sm:$0x1] 0.0
            %340 = vst [vmem:[#allocation4] sm:$0x1] 0.0
          $region64: #{tpu_custom_call.1} parent=59 // pred_fallthru
            _
          %v341 = vld [vmem:[%s286] sm:$0xff]
          %v342 = vld [vmem:[%s286 + $0x8] sm:$0xff]
          %v343 = vld [vmem:[%s286 + $0x10] sm:$0xff]
          %v344 = vld [vmem:[%s286 + $0x18] sm:$0xff]
          %v345 = vld [vmem:[%s286 + $0x20] sm:$0xff]
          %v346 = vld [vmem:[%s286 + $0x28] sm:$0xff]
          %v347 = vld [vmem:[%s286 + $0x30] sm:$0xff]
          %v348 = vld [vmem:[%s286 + $0x38] sm:$0xff]
          %v349 = vld [vmem:[%s286 + $0x40] sm:$0xff]
          %v350 = vld [vmem:[%s286 + $0x48] sm:$0xff]
          %v351 = vld [vmem:[%s286 + $0x50] sm:$0xff]
          %v352 = vld [vmem:[%s286 + $0x58] sm:$0xff]
          %v353 = vld [vmem:[%s286 + $0x60] sm:$0xff]
          %v354 = vld [vmem:[%s286 + $0x68] sm:$0xff]
          %v355 = vld [vmem:[%s286 + $0x70] sm:$0xff]
          %v356 = vld [vmem:[%s286 + $0x78] sm:$0xff]
          %v357 = vld [vmem:[%s286 + $0x80] sm:$0xff]
          %v358 = vld [vmem:[%s286 + $0x88] sm:$0xff]
          %v359 = vld [vmem:[%s286 + $0x90] sm:$0xff]
          %v360 = vld [vmem:[%s286 + $0x98] sm:$0xff]
          %v361 = vld [vmem:[%s286 + $0xa0] sm:$0xff]
          %v362 = vld [vmem:[%s286 + $0xa8] sm:$0xff]
          %v363 = vld [vmem:[%s286 + $0xb0] sm:$0xff]
          %v364 = vld [vmem:[%s286 + $0xb8] sm:$0xff]
          %v365 = vld [vmem:[%s286 + $0xc0] sm:$0xff]
          %v366 = vld [vmem:[%s286 + $0xc8] sm:$0xff]
          %v367 = vld [vmem:[%s286 + $0xd0] sm:$0xff]
          %v368 = vld [vmem:[%s286 + $0xd8] sm:$0xff]
          %v369 = vld [vmem:[%s286 + $0xe0] sm:$0xff]
          %v370 = vld [vmem:[%s286 + $0xe8] sm:$0xff]
          %v371 = vld [vmem:[%s286 + $0xf0] sm:$0xff]
          %v372 = vld [vmem:[%s286 + $0xf8] sm:$0xff]
          %v373 = vpack.c.bf16 %v343, %v341
          %v374 = vpack.c.bf16 %v344, %v342
          %v375 = vpack.c.bf16 %v347, %v345
          %v376 = vpack.c.bf16 %v348, %v346
          %v377 = vpack.c.bf16 %v351, %v349
          %v378 = vpack.c.bf16 %v352, %v350
          %v379 = vpack.c.bf16 %v355, %v353
          %v380 = vpack.c.bf16 %v356, %v354
          %v381 = vpack.c.bf16 %v359, %v357
          %v382 = vpack.c.bf16 %v360, %v358
          %v383 = vpack.c.bf16 %v363, %v361
          %v384 = vpack.c.bf16 %v364, %v362
          %v385 = vpack.c.bf16 %v367, %v365
          %v386 = vpack.c.bf16 %v368, %v366
          %v387 = vpack.c.bf16 %v371, %v369
          %v388 = vpack.c.bf16 %v372, %v370
          %v389 = vld [vmem:[#allocation10] sm:$0xf]
          %v390 = vld [vmem:[#allocation10 + $0x4] sm:$0xf]
          %v391 = vld [vmem:[#allocation10 + $0x8] sm:$0xf]
          %v392 = vld [vmem:[#allocation10 + $0xc] sm:$0xf]
          %v393 = vld [vmem:[#allocation10 + $0x10] sm:$0xf]
          %v394 = vld [vmem:[#allocation10 + $0x14] sm:$0xf]
          %v395 = vld [vmem:[#allocation10 + $0x18] sm:$0xf]
          %v396 = vld [vmem:[#allocation10 + $0x1c] sm:$0xf]
          %v397 = vld [vmem:[#allocation10 + $0x20] sm:$0xf]
          %v398 = vld [vmem:[#allocation10 + $0x24] sm:$0xf]
          %v399 = vld [vmem:[#allocation10 + $0x28] sm:$0xf]
          %v400 = vld [vmem:[#allocation10 + $0x2c] sm:$0xf]
          %v401 = vld [vmem:[#allocation10 + $0x30] sm:$0xf]
          %v402 = vld [vmem:[#allocation10 + $0x34] sm:$0xf]
          %v403 = vld [vmem:[#allocation10 + $0x38] sm:$0xf]
          %v404 = vld [vmem:[#allocation10 + $0x3c] sm:$0xf]
          %v405 = vld [vmem:[#allocation10 + $0x40] sm:$0xf]
          %v406 = vld [vmem:[#allocation10 + $0x44] sm:$0xf]
          %v407 = vld [vmem:[#allocation10 + $0x48] sm:$0xf]
          %v408 = vld [vmem:[#allocation10 + $0x4c] sm:$0xf]
          %v409 = vld [vmem:[#allocation10 + $0x50] sm:$0xf]
          %v410 = vld [vmem:[#allocation10 + $0x54] sm:$0xf]
          %v411 = vld [vmem:[#allocation10 + $0x58] sm:$0xf]
          %v412 = vld [vmem:[#allocation10 + $0x5c] sm:$0xf]
          %v413 = vld [vmem:[#allocation10 + $0x60] sm:$0xf]
          %v414 = vld [vmem:[#allocation10 + $0x64] sm:$0xf]
          %v415 = vld [vmem:[#allocation10 + $0x68] sm:$0xf]
          %v416 = vld [vmem:[#allocation10 + $0x6c] sm:$0xf]
          %v417 = vld [vmem:[#allocation10 + $0x70] sm:$0xf]
          %v418 = vld [vmem:[#allocation10 + $0x74] sm:$0xf]
          %v419 = vld [vmem:[#allocation10 + $0x78] sm:$0xf]
          %v420 = vld [vmem:[#allocation10 + $0x7c] sm:$0xf]
          %v453 = vunpack.c.l.b16 %v389
          %v454 = vunpack.c.l.b16 %v390
          %v455 = vunpack.c.l.b16 %v391
          %v456 = vunpack.c.l.b16 %v392
          %v457 = vunpack.c.l.b16 %v393
          %v458 = vunpack.c.l.b16 %v394
          %v459 = vunpack.c.l.b16 %v395
          %v460 = vunpack.c.l.b16 %v396
          %v461 = vunpack.c.l.b16 %v397
          %v462 = vunpack.c.l.b16 %v398
          %v463 = vunpack.c.l.b16 %v399
          %v464 = vunpack.c.l.b16 %v400
          %v465 = vunpack.c.l.b16 %v401
          %v466 = vunpack.c.l.b16 %v402
          %v467 = vunpack.c.l.b16 %v403
          %v468 = vunpack.c.l.b16 %v404
          %v469 = vunpack.c.l.b16 %v405
          %v470 = vunpack.c.l.b16 %v406
          %v471 = vunpack.c.l.b16 %v407
          %v472 = vunpack.c.l.b16 %v408
          %v473 = vunpack.c.l.b16 %v409
          %v474 = vunpack.c.l.b16 %v410
          %v475 = vunpack.c.l.b16 %v411
          %v476 = vunpack.c.l.b16 %v412
          %v477 = vunpack.c.l.b16 %v413
          %v478 = vunpack.c.l.b16 %v414
          %v479 = vunpack.c.l.b16 %v415
          %v480 = vunpack.c.l.b16 %v416
          %v481 = vunpack.c.l.b16 %v417
          %v482 = vunpack.c.l.b16 %v418
          %v483 = vunpack.c.l.b16 %v419
          %v484 = vunpack.c.l.b16 %v420
          %v485 = vpack.c.b16 %v454, %v453
          %v486 = vpack.c.b16 %v456, %v455
          %v487 = vpack.c.b16 %v458, %v457
          %v488 = vpack.c.b16 %v460, %v459
          %v489 = vpack.c.b16 %v462, %v461
          %v490 = vpack.c.b16 %v464, %v463
          %v491 = vpack.c.b16 %v466, %v465
          %v492 = vpack.c.b16 %v468, %v467
          %v493 = vpack.c.b16 %v470, %v469
          %v494 = vpack.c.b16 %v472, %v471
          %v495 = vpack.c.b16 %v474, %v473
          %v496 = vpack.c.b16 %v476, %v475
          %v497 = vpack.c.b16 %v478, %v477
          %v498 = vpack.c.b16 %v480, %v479
          %v499 = vpack.c.b16 %v482, %v481
          %v500 = vpack.c.b16 %v484, %v483
          %517 = vmatprep.subr.bf16.mxu0 0
          %518 = vmatpush1.bf16.msra.mxu0 %v492
          %519 = vmatprep.subr.bf16.mxu0 0
          %520 = vmatpush1.bf16.msra.mxu0 %v491
          %521 = vmatprep.subr.bf16.mxu0 0
          %522 = vmatpush1.bf16.msra.mxu0 %v490
          %523 = vmatprep.subr.bf16.mxu0 0
          %524 = vmatpush1.bf16.msra.mxu0 %v489
          %525 = vmatprep.subr.bf16.mxu0 0
          %526 = vmatpush1.bf16.msra.mxu0 %v488
          %527 = vmatprep.subr.bf16.mxu0 0
          %528 = vmatpush1.bf16.msra.mxu0 %v487
          %529 = vmatprep.subr.bf16.mxu0 0
          %530 = vmatpush1.bf16.msra.mxu0 %v486
          %531 = vmatprep.subr.bf16.mxu0 0
          %532 = vmatpush1.bf16.msra.mxu0 %v485
          %533 = vmatprep.subr.bf16.mxu0 0
          %534 = vmatpush2.bf16.msra.mxu0 %v500
          %535 = vmatprep.subr.bf16.mxu0 0
          %536 = vmatpush2.bf16.msra.mxu0 %v499
          %537 = vmatprep.subr.bf16.mxu0 0
          %538 = vmatpush2.bf16.msra.mxu0 %v498
          %539 = vmatprep.subr.bf16.mxu0 0
          %540 = vmatpush2.bf16.msra.mxu0 %v497
          %541 = vmatprep.subr.bf16.mxu0 0
          %542 = vmatpush2.bf16.msra.mxu0 %v496
          %543 = vmatprep.subr.bf16.mxu0 0
          %544 = vmatpush2.bf16.msra.mxu0 %v495
          %545 = vmatprep.subr.bf16.mxu0 0
          %546 = vmatpush2.bf16.msra.mxu0 %v494
          %547 = vmatprep.subr.bf16.mxu0 0
          %548 = vmatpush2.bf16.msra.mxu0 %v493
          %549 = vmatprep.mubr.bf16.mxu0 %v374
          %550 = vmatmul.mubr.bf16.gmra.mxu0 %v373
          %v551 = vpop.f32.mrf.mxu0
          %v552 = vadd.f32 0.0, %v551
          %v553 = vpop.f32.mrf.mxu0
          %v554 = vpop.f32.mrf.mxu0
          %v555 = vadd.f32 0.0, %v554
          %v556 = vpop.f32.mrf.mxu0
          %557 = vmatprep.mubr.bf16.mxu0 %v376
          %558 = vmatmul.mubr.bf16.gmra.mxu0 %v375
          %v559 = vpop.f32.mrf.mxu0
          %v560 = vadd.f32 0.0, %v559
          %v561 = vpop.f32.mrf.mxu0
          %v562 = vpop.f32.mrf.mxu0
          %v563 = vadd.f32 0.0, %v562
          %v564 = vpop.f32.mrf.mxu0
          %565 = vmatprep.mubr.bf16.mxu0 %v378
          %566 = vmatmul.mubr.bf16.gmra.mxu0 %v377
          %v567 = vpop.f32.mrf.mxu0
          %v568 = vadd.f32 0.0, %v567
          %v569 = vpop.f32.mrf.mxu0
          %v570 = vpop.f32.mrf.mxu0
          %v571 = vadd.f32 0.0, %v570
          %v572 = vpop.f32.mrf.mxu0
          %573 = vmatprep.mubr.bf16.mxu0 %v380
          %574 = vmatmul.mubr.bf16.gmra.mxu0 %v379
          %v575 = vpop.f32.mrf.mxu0
          %v576 = vadd.f32 0.0, %v575
          %v577 = vpop.f32.mrf.mxu0
          %v578 = vpop.f32.mrf.mxu0
          %v579 = vadd.f32 0.0, %v578
          %v580 = vpop.f32.mrf.mxu0
          %581 = vmatprep.mubr.bf16.mxu0 %v382
          %582 = vmatmul.mubr.bf16.gmra.mxu0 %v381
          %v583 = vpop.f32.mrf.mxu0
          %v584 = vadd.f32 0.0, %v583
          %v585 = vpop.f32.mrf.mxu0
          %v586 = vpop.f32.mrf.mxu0
          %v587 = vadd.f32 0.0, %v586
          %v588 = vpop.f32.mrf.mxu0
          %589 = vmatprep.mubr.bf16.mxu0 %v384
          %590 = vmatmul.mubr.bf16.gmra.mxu0 %v383
          %v591 = vpop.f32.mrf.mxu0
          %v592 = vadd.f32 0.0, %v591
          %v593 = vpop.f32.mrf.mxu0
          %v594 = vpop.f32.mrf.mxu0
          %v595 = vadd.f32 0.0, %v594
          %v596 = vpop.f32.mrf.mxu0
          %597 = vmatprep.mubr.bf16.mxu0 %v386
          %598 = vmatmul.mubr.bf16.gmra.mxu0 %v385
          %v599 = vpop.f32.mrf.mxu0
          %v600 = vadd.f32 0.0, %v599
          %v601 = vpop.f32.mrf.mxu0
          %v602 = vpop.f32.mrf.mxu0
          %v603 = vadd.f32 0.0, %v602
          %v604 = vpop.f32.mrf.mxu0
          %605 = vmatprep.mubr.bf16.mxu0 %v388
          %606 = vmatmul.mubr.bf16.gmra.mxu0 %v387
          %v607 = vpop.f32.mrf.mxu0
          %v608 = vadd.f32 0.0, %v607
          %v609 = vpop.f32.mrf.mxu0
          %v610 = vpop.f32.mrf.mxu0
          %v611 = vadd.f32 0.0, %v610
          %v612 = vpop.f32.mrf.mxu0
          %613 = vdwg.mxu0
          %v614 = vld [vmem:[#allocation3] sm:$0x1]
          %v615 = vadd.f32 %v552, %v555
          %v616 = vadd.f32 %v615, %v560
          %v617 = vadd.f32 %v616, %v563
          %v618 = vadd.f32 %v617, %v568
          %v619 = vadd.f32 %v618, %v571
          %v620 = vadd.f32 %v619, %v576
          %v621 = vadd.f32 %v620, %v579
          %v622 = vadd.f32 %v621, %v584
          %v623 = vadd.f32 %v622, %v587
          %v624 = vadd.f32 %v623, %v592
          %v625 = vadd.f32 %v624, %v595
          %v626 = vadd.f32 %v625, %v600
          %v627 = vadd.f32 %v626, %v603
          %v628 = vadd.f32 %v627, %v608
          %v629 = vadd.f32 %v628, %v611
          %v630 = vrot.slane %v629, 4
          %v631 = vadd.f32 %v629, %v630
          %v632 = vrot.slane %v631, 2
          %v633 = vadd.f32 %v631, %v632
          %v634 = vrot.slane %v633, 1
          %v635 = vadd.f32 %v633, %v634
          %v636 = vadd.f32 %v614, %v635
          %637 = vst [vmem:[#allocation3] sm:$0x1] %v636
          %v638 = vld [vmem:[#allocation4] sm:$0x1]
          %v639 = vmul.f32 %v552, %v552
          %v640 = vmul.f32 %v555, %v555
          %v641 = vmul.f32 %v560, %v560
          %v642 = vmul.f32 %v563, %v563
          %v643 = vmul.f32 %v568, %v568
          %v644 = vmul.f32 %v571, %v571
          %v645 = vmul.f32 %v576, %v576
          %v646 = vmul.f32 %v579, %v579
          %v647 = vmul.f32 %v584, %v584
          %v648 = vmul.f32 %v587, %v587
          %v649 = vmul.f32 %v592, %v592
          %v650 = vmul.f32 %v595, %v595
          %v651 = vmul.f32 %v600, %v600
          %v652 = vmul.f32 %v603, %v603
          %v653 = vmul.f32 %v608, %v608
          %v654 = vmul.f32 %v611, %v611
          %v655 = vadd.f32 %v639, %v640
          %v656 = vadd.f32 %v655, %v641
          %v657 = vadd.f32 %v656, %v642
          %v658 = vadd.f32 %v657, %v643
          %v659 = vadd.f32 %v658, %v644
          %v660 = vadd.f32 %v659, %v645
          %v661 = vadd.f32 %v660, %v646
          %v662 = vadd.f32 %v661, %v647
          %v663 = vadd.f32 %v662, %v648
          %v664 = vadd.f32 %v663, %v649
          %v665 = vadd.f32 %v664, %v650
          %v666 = vadd.f32 %v665, %v651
          %v667 = vadd.f32 %v666, %v652
          %v668 = vadd.f32 %v667, %v653
          %v669 = vadd.f32 %v668, %v654
          %v670 = vrot.slane %v669, 4
          %v671 = vadd.f32 %v669, %v670
          %v672 = vrot.slane %v671, 2
          %v673 = vadd.f32 %v671, %v672
          %v674 = vrot.slane %v673, 1
          %v675 = vadd.f32 %v673, %v674
          %v676 = vadd.f32 %v638, %v675
          %677 = vst [vmem:[#allocation4] sm:$0x1] %v676
          %s678 = scalar_lea.vmem [#allocation2], %s330
          %679 = vst [vmem:[%s678] sm:$0xff] %v552
          %680 = vst [vmem:[%s678 + $0x8] sm:$0xff] %v555
          %681 = vst [vmem:[%s678 + $0x10] sm:$0xff] %v560
          %682 = vst [vmem:[%s678 + $0x18] sm:$0xff] %v563
          %683 = vst [vmem:[%s678 + $0x20] sm:$0xff] %v568
          %684 = vst [vmem:[%s678 + $0x28] sm:$0xff] %v571
          %685 = vst [vmem:[%s678 + $0x30] sm:$0xff] %v576
          %686 = vst [vmem:[%s678 + $0x38] sm:$0xff] %v579
          %687 = vst [vmem:[%s678 + $0x40] sm:$0xff] %v584
          %688 = vst [vmem:[%s678 + $0x48] sm:$0xff] %v587
          %689 = vst [vmem:[%s678 + $0x50] sm:$0xff] %v592
          %690 = vst [vmem:[%s678 + $0x58] sm:$0xff] %v595
          %691 = vst [vmem:[%s678 + $0x60] sm:$0xff] %v600
          %692 = vst [vmem:[%s678 + $0x68] sm:$0xff] %v603
          %693 = vst [vmem:[%s678 + $0x70] sm:$0xff] %v608
          %694 = vst [vmem:[%s678 + $0x78] sm:$0xff] %v611
        $region60: #{tpu_custom_call.1} parent=43 // pred_fallthru
          _
        %p695 = scmp.eq.s32.totalorder %s28, 1
        // Predicated region
        $region65: #{tpu_custom_call.1} parent=43 // pred_check
          %p696 = pneg %p695
        $region66: #{tpu_custom_call.1} parent=43 // pred_check_branch
          %698 = sbr.rel (%p696) target = $region68
        $region67: #{tpu_custom_call.1} parent=43 // pred_region
          %p699 = scmp.eq.s32.totalorder %s29, 0
          // Predicated region
          $region69: #{tpu_custom_call.1} parent=67 // pred_check
            %p700 = pneg %p699
          $region70: #{tpu_custom_call.1} parent=67 // pred_check_branch
            %702 = sbr.rel (%p700) target = $region72
          $region71: #{tpu_custom_call.1} parent=67 // pred_region
            %v703 = vld [vmem:[#allocation3] sm:$0x1]
            %v704 = vmul.f32 %v703, 0.00390625
            %v705 = vld [vmem:[#allocation4] sm:$0x1]
            %v706 = vmul.f32 %v705, 0.00390625
            %v707 = vmul.f32 %v704, %v704
            %v708 = vsub.f32 %v706, %v707
            %v709 = vmax.f32 %v708, 0.0
            %v710 = vld [vmem:[%s2] sm:$0x1]
            %v711 = vadd.f32 %v709, 1e-05
            %v712 = vrsqrt.pop %v711
            %v713 = vmul.f32 %v710, %v712
            %714 = vst [vmem:[#allocation5] sm:$0x1] %v713
            %v715 = vld [vmem:[%s3] sm:$0x1]
            %v716 = vmul.f32 %v704, %v713
            %v717 = vsub.f32 %v715, %v716
            %718 = vst [vmem:[#allocation6] sm:$0x1] %v717
          $region72: #{tpu_custom_call.1} parent=67 // pred_fallthru
            _
          %s719 = scalar_lea.vmem [#allocation2], %s330
          %v720 = vld [vmem:[%s719] sm:$0xff]
          %v721 = vld [vmem:[%s719 + $0x8] sm:$0xff]
          %v722 = vld [vmem:[%s719 + $0x10] sm:$0xff]
          %v723 = vld [vmem:[%s719 + $0x18] sm:$0xff]
          %v724 = vld [vmem:[%s719 + $0x20] sm:$0xff]
          %v725 = vld [vmem:[%s719 + $0x28] sm:$0xff]
          %v726 = vld [vmem:[%s719 + $0x30] sm:$0xff]
          %v727 = vld [vmem:[%s719 + $0x38] sm:$0xff]
          %v728 = vld [vmem:[%s719 + $0x40] sm:$0xff]
          %v729 = vld [vmem:[%s719 + $0x48] sm:$0xff]
          %v730 = vld [vmem:[%s719 + $0x50] sm:$0xff]
          %v731 = vld [vmem:[%s719 + $0x58] sm:$0xff]
          %v732 = vld [vmem:[%s719 + $0x60] sm:$0xff]
          %v733 = vld [vmem:[%s719 + $0x68] sm:$0xff]
          %v734 = vld [vmem:[%s719 + $0x70] sm:$0xff]
          %v735 = vld [vmem:[%s719 + $0x78] sm:$0xff]
          %v736 = vld [vmem:[#allocation5] sm:$0x1]
          %v738 = vlaneseq
          %v739 = vshrl.u32 %v738, 7
          %v740 = vsub.s32 0, %v739
          %v741 = vrot.slane %v736, %v740
          %v743 = vmul.f32 %v720, %v741
          %v744 = vmul.f32 %v721, %v741
          %v745 = vmul.f32 %v722, %v741
          %v746 = vmul.f32 %v723, %v741
          %v747 = vmul.f32 %v724, %v741
          %v748 = vmul.f32 %v725, %v741
          %v749 = vmul.f32 %v726, %v741
          %v750 = vmul.f32 %v727, %v741
          %v751 = vmul.f32 %v728, %v741
          %v752 = vmul.f32 %v729, %v741
          %v753 = vmul.f32 %v730, %v741
          %v754 = vmul.f32 %v731, %v741
          %v755 = vmul.f32 %v732, %v741
          %v756 = vmul.f32 %v733, %v741
          %v757 = vmul.f32 %v734, %v741
          %v758 = vmul.f32 %v735, %v741
          %v759 = vld [vmem:[#allocation6] sm:$0x1]
          %v761 = vlaneseq
          %v762 = vshrl.u32 %v761, 7
          %v763 = vsub.s32 0, %v762
          %v764 = vrot.slane %v759, %v763
          %v766 = vadd.f32 %v743, %v764
          %v767 = vadd.f32 %v744, %v764
          %v768 = vadd.f32 %v745, %v764
          %v769 = vadd.f32 %v746, %v764
          %v770 = vadd.f32 %v747, %v764
          %v771 = vadd.f32 %v748, %v764
          %v772 = vadd.f32 %v749, %v764
          %v773 = vadd.f32 %v750, %v764
          %v774 = vadd.f32 %v751, %v764
          %v775 = vadd.f32 %v752, %v764
          %v776 = vadd.f32 %v753, %v764
          %v777 = vadd.f32 %v754, %v764
          %v778 = vadd.f32 %v755, %v764
          %v779 = vadd.f32 %v756, %v764
          %v780 = vadd.f32 %v757, %v764
          %v781 = vadd.f32 %v758, %v764
          %v782 = vmax.f32 %v766, 0.0
          %v783 = vmax.f32 %v767, 0.0
          %v784 = vmax.f32 %v768, 0.0
          %v785 = vmax.f32 %v769, 0.0
          %v786 = vmax.f32 %v770, 0.0
          %v787 = vmax.f32 %v771, 0.0
          %v788 = vmax.f32 %v772, 0.0
          %v789 = vmax.f32 %v773, 0.0
          %v790 = vmax.f32 %v774, 0.0
          %v791 = vmax.f32 %v775, 0.0
          %v792 = vmax.f32 %v776, 0.0
          %v793 = vmax.f32 %v777, 0.0
          %v794 = vmax.f32 %v778, 0.0
          %v795 = vmax.f32 %v779, 0.0
          %v796 = vmax.f32 %v780, 0.0
          %v797 = vmax.f32 %v781, 0.0
          %v798 = vpack.c.bf16 %v783, %v782
          %v799 = vpack.c.bf16 %v785, %v784
          %v800 = vpack.c.bf16 %v787, %v786
          %v801 = vpack.c.bf16 %v789, %v788
          %v802 = vpack.c.bf16 %v791, %v790
          %v803 = vpack.c.bf16 %v793, %v792
          %v804 = vpack.c.bf16 %v795, %v794
          %v805 = vpack.c.bf16 %v797, %v796
          %v806 = vld [vmem:[#allocation12] sm:$0xff]
          %v807 = vld [vmem:[#allocation12 + $0x8] sm:$0xff]
          %v808 = vld [vmem:[#allocation12 + $0x10] sm:$0xff]
          %v809 = vld [vmem:[#allocation12 + $0x18] sm:$0xff]
          %v810 = vld [vmem:[#allocation12 + $0x20] sm:$0xff]
          %v811 = vld [vmem:[#allocation12 + $0x28] sm:$0xff]
          %v812 = vld [vmem:[#allocation12 + $0x30] sm:$0xff]
          %v813 = vld [vmem:[#allocation12 + $0x38] sm:$0xff]
          %v814 = vld [vmem:[#allocation12 + $0x40] sm:$0xff]
          %v815 = vld [vmem:[#allocation12 + $0x48] sm:$0xff]
          %v816 = vld [vmem:[#allocation12 + $0x50] sm:$0xff]
          %v817 = vld [vmem:[#allocation12 + $0x58] sm:$0xff]
          %v818 = vld [vmem:[#allocation12 + $0x60] sm:$0xff]
          %v819 = vld [vmem:[#allocation12 + $0x68] sm:$0xff]
          %v820 = vld [vmem:[#allocation12 + $0x70] sm:$0xff]
          %v821 = vld [vmem:[#allocation12 + $0x78] sm:$0xff]
          %v822 = vld [vmem:[%s5] sm:$0x3]
          %v824 = vlaneseq
          %v825 = vshrl.u32 %v824, 7
          %v826 = vsub.s32 0, %v825
          %v827 = vrot.slane %v822, %v826
          %v828 = vlaneseq
          %v829 = vshrl.u32 %v828, 7
          %v830 = vsub.s32 1, %v829
          %v831 = vrot.slane %v822, %v830
          %v850 = vunpack.c.l.b16 %v806
          %v851 = vunpack.c.h.b16 %v806
          %v852 = vunpack.c.l.b16 %v807
          %v853 = vunpack.c.h.b16 %v807
          %v854 = vunpack.c.l.b16 %v808
          %v855 = vunpack.c.h.b16 %v808
          %v856 = vunpack.c.l.b16 %v809
          %v857 = vunpack.c.h.b16 %v809
          %v858 = vunpack.c.l.b16 %v810
          %v859 = vunpack.c.h.b16 %v810
          %v860 = vunpack.c.l.b16 %v811
          %v861 = vunpack.c.h.b16 %v811
          %v862 = vunpack.c.l.b16 %v812
          %v863 = vunpack.c.h.b16 %v812
          %v864 = vunpack.c.l.b16 %v813
          %v865 = vunpack.c.h.b16 %v813
          %v866 = vunpack.c.l.b16 %v814
          %v867 = vunpack.c.h.b16 %v814
          %v868 = vunpack.c.l.b16 %v815
          %v869 = vunpack.c.h.b16 %v815
          %v870 = vunpack.c.l.b16 %v816
          %v871 = vunpack.c.h.b16 %v816
          %v872 = vunpack.c.l.b16 %v817
          %v873 = vunpack.c.h.b16 %v817
          %v874 = vunpack.c.l.b16 %v818
          %v875 = vunpack.c.h.b16 %v818
          %v876 = vunpack.c.l.b16 %v819
          %v877 = vunpack.c.h.b16 %v819
          %v878 = vunpack.c.l.b16 %v820
          %v879 = vunpack.c.h.b16 %v820
          %v880 = vunpack.c.l.b16 %v821
          %v881 = vunpack.c.h.b16 %v821
          %v882 = vpack.c.b16 %v852, %v850
          %v883 = vpack.c.b16 %v853, %v851
          %v884 = vpack.c.b16 %v856, %v854
          %v885 = vpack.c.b16 %v857, %v855
          %v886 = vpack.c.b16 %v860, %v858
          %v887 = vpack.c.b16 %v861, %v859
          %v888 = vpack.c.b16 %v864, %v862
          %v889 = vpack.c.b16 %v865, %v863
          %v890 = vpack.c.b16 %v868, %v866
          %v891 = vpack.c.b16 %v869, %v867
          %v892 = vpack.c.b16 %v872, %v870
          %v893 = vpack.c.b16 %v873, %v871
          %v894 = vpack.c.b16 %v876, %v874
          %v895 = vpack.c.b16 %v877, %v875
          %v896 = vpack.c.b16 %v880, %v878
          %v897 = vpack.c.b16 %v881, %v879
          %914 = vmatprep.subr.bf16.mxu0 %v897
          %915 = vmatpush1.bf16.msra.mxu0 %v896
          %916 = vmatprep.subr.bf16.mxu0 %v895
          %917 = vmatpush1.bf16.msra.mxu0 %v894
          %918 = vmatprep.subr.bf16.mxu0 %v893
          %919 = vmatpush1.bf16.msra.mxu0 %v892
          %920 = vmatprep.subr.bf16.mxu0 %v891
          %921 = vmatpush1.bf16.msra.mxu0 %v890
          %922 = vmatprep.subr.bf16.mxu0 %v889
          %923 = vmatpush1.bf16.msra.mxu0 %v888
          %924 = vmatprep.subr.bf16.mxu0 %v887
          %925 = vmatpush1.bf16.msra.mxu0 %v886
          %926 = vmatprep.subr.bf16.mxu0 %v885
          %927 = vmatpush1.bf16.msra.mxu0 %v884
          %928 = vmatprep.subr.bf16.mxu0 %v883
          %929 = vmatpush1.bf16.msra.mxu0 %v882
          %930 = vmatprep.subr.bf16.mxu0 0
          %931 = vmatpush2.bf16.msra.mxu0 0
          %932 = vmatprep.subr.bf16.mxu0 0
          %933 = vmatpush2.bf16.msra.mxu0 0
          %934 = vmatprep.subr.bf16.mxu0 0
          %935 = vmatpush2.bf16.msra.mxu0 0
          %936 = vmatprep.subr.bf16.mxu0 0
          %937 = vmatpush2.bf16.msra.mxu0 0
          %938 = vmatprep.subr.bf16.mxu0 0
          %939 = vmatpush2.bf16.msra.mxu0 0
          %940 = vmatprep.subr.bf16.mxu0 0
          %941 = vmatpush2.bf16.msra.mxu0 0
          %942 = vmatprep.subr.bf16.mxu0 0
          %943 = vmatpush2.bf16.msra.mxu0 0
          %944 = vmatprep.subr.bf16.mxu0 0
          %945 = vmatpush2.bf16.msra.mxu0 0
          %946 = vmatprep.mubr.bf16.mxu0 0
          %947 = vmatmul.mubr.bf16.gmra.mxu0 %v798
          %v948 = vpop.f32.mrf.mxu0
          %v949 = vadd.f32 %v827, %v948
          %v950 = vpop.f32.mrf.mxu0
          %v951 = vadd.f32 %v831, %v950
          %v952 = vpop.f32.mrf.mxu0
          %v953 = vadd.f32 %v827, %v952
          %v954 = vpop.f32.mrf.mxu0
          %v955 = vadd.f32 %v831, %v954
          %956 = vmatprep.mubr.bf16.mxu0 0
          %957 = vmatmul.mubr.bf16.gmra.mxu0 %v799
          %v958 = vpop.f32.mrf.mxu0
          %v959 = vadd.f32 %v827, %v958
          %v960 = vpop.f32.mrf.mxu0
          %v961 = vadd.f32 %v831, %v960
          %v962 = vpop.f32.mrf.mxu0
          %v963 = vadd.f32 %v827, %v962
          %v964 = vpop.f32.mrf.mxu0
          %v965 = vadd.f32 %v831, %v964
          %966 = vmatprep.mubr.bf16.mxu0 0
          %967 = vmatmul.mubr.bf16.gmra.mxu0 %v800
          %v968 = vpop.f32.mrf.mxu0
          %v969 = vadd.f32 %v827, %v968
          %v970 = vpop.f32.mrf.mxu0
          %v971 = vadd.f32 %v831, %v970
          %v972 = vpop.f32.mrf.mxu0
          %v973 = vadd.f32 %v827, %v972
          %v974 = vpop.f32.mrf.mxu0
          %v975 = vadd.f32 %v831, %v974
          %976 = vmatprep.mubr.bf16.mxu0 0
          %977 = vmatmul.mubr.bf16.gmra.mxu0 %v801
          %v978 = vpop.f32.mrf.mxu0
          %v979 = vadd.f32 %v827, %v978
          %v980 = vpop.f32.mrf.mxu0
          %v981 = vadd.f32 %v831, %v980
          %v982 = vpop.f32.mrf.mxu0
          %v983 = vadd.f32 %v827, %v982
          %v984 = vpop.f32.mrf.mxu0
          %v985 = vadd.f32 %v831, %v984
          %986 = vmatprep.mubr.bf16.mxu0 0
          %987 = vmatmul.mubr.bf16.gmra.mxu0 %v802
          %v988 = vpop.f32.mrf.mxu0
          %v989 = vadd.f32 %v827, %v988
          %v990 = vpop.f32.mrf.mxu0
          %v991 = vadd.f32 %v831, %v990
          %v992 = vpop.f32.mrf.mxu0
          %v993 = vadd.f32 %v827, %v992
          %v994 = vpop.f32.mrf.mxu0
          %v995 = vadd.f32 %v831, %v994
          %996 = vmatprep.mubr.bf16.mxu0 0
          %997 = vmatmul.mubr.bf16.gmra.mxu0 %v803
          %v998 = vpop.f32.mrf.mxu0
          %v999 = vadd.f32 %v827, %v998
          %v1000 = vpop.f32.mrf.mxu0
          %v1001 = vadd.f32 %v831, %v1000
          %v1002 = vpop.f32.mrf.mxu0
          %v1003 = vadd.f32 %v827, %v1002
          %v1004 = vpop.f32.mrf.mxu0
          %v1005 = vadd.f32 %v831, %v1004
          %1006 = vmatprep.mubr.bf16.mxu0 0
          %1007 = vmatmul.mubr.bf16.gmra.mxu0 %v804
          %v1008 = vpop.f32.mrf.mxu0
          %v1009 = vadd.f32 %v827, %v1008
          %v1010 = vpop.f32.mrf.mxu0
          %v1011 = vadd.f32 %v831, %v1010
          %v1012 = vpop.f32.mrf.mxu0
          %v1013 = vadd.f32 %v827, %v1012
          %v1014 = vpop.f32.mrf.mxu0
          %v1015 = vadd.f32 %v831, %v1014
          %1016 = vmatprep.mubr.bf16.mxu0 0
          %1017 = vmatmul.mubr.bf16.gmra.mxu0 %v805
          %v1018 = vpop.f32.mrf.mxu0
          %v1019 = vadd.f32 %v827, %v1018
          %v1020 = vpop.f32.mrf.mxu0
          %v1021 = vadd.f32 %v831, %v1020
          %v1022 = vpop.f32.mrf.mxu0
          %v1023 = vadd.f32 %v827, %v1022
          %v1024 = vpop.f32.mrf.mxu0
          %v1025 = vadd.f32 %v831, %v1024
          %1026 = vdwg.mxu0
          %1027 = vst [vmem:[%s322] sm:$0xff] %v949
          %1028 = vst [vmem:[%s322 + $0x8] sm:$0xff] %v951
          %1029 = vst [vmem:[%s322 + $0x10] sm:$0xff] %v953
          %1030 = vst [vmem:[%s322 + $0x18] sm:$0xff] %v955
          %1031 = vst [vmem:[%s322 + $0x20] sm:$0xff] %v959
          %1032 = vst [vmem:[%s322 + $0x28] sm:$0xff] %v961
          %1033 = vst [vmem:[%s322 + $0x30] sm:$0xff] %v963
          %1034 = vst [vmem:[%s322 + $0x38] sm:$0xff] %v965
          %1035 = vst [vmem:[%s322 + $0x40] sm:$0xff] %v969
          %1036 = vst [vmem:[%s322 + $0x48] sm:$0xff] %v971
          %1037 = vst [vmem:[%s322 + $0x50] sm:$0xff] %v973
          %1038 = vst [vmem:[%s322 + $0x58] sm:$0xff] %v975
          %1039 = vst [vmem:[%s322 + $0x60] sm:$0xff] %v979
          %1040 = vst [vmem:[%s322 + $0x68] sm:$0xff] %v981
          %1041 = vst [vmem:[%s322 + $0x70] sm:$0xff] %v983
          %1042 = vst [vmem:[%s322 + $0x78] sm:$0xff] %v985
          %1043 = vst [vmem:[%s322 + $0x80] sm:$0xff] %v989
          %1044 = vst [vmem:[%s322 + $0x88] sm:$0xff] %v991
          %1045 = vst [vmem:[%s322 + $0x90] sm:$0xff] %v993
          %1046 = vst [vmem:[%s322 + $0x98] sm:$0xff] %v995
          %1047 = vst [vmem:[%s322 + $0xa0] sm:$0xff] %v999
          %1048 = vst [vmem:[%s322 + $0xa8] sm:$0xff] %v1001
          %1049 = vst [vmem:[%s322 + $0xb0] sm:$0xff] %v1003
          %1050 = vst [vmem:[%s322 + $0xb8] sm:$0xff] %v1005
          %1051 = vst [vmem:[%s322 + $0xc0] sm:$0xff] %v1009
          %1052 = vst [vmem:[%s322 + $0xc8] sm:$0xff] %v1011
          %1053 = vst [vmem:[%s322 + $0xd0] sm:$0xff] %v1013
          %1054 = vst [vmem:[%s322 + $0xd8] sm:$0xff] %v1015
          %1055 = vst [vmem:[%s322 + $0xe0] sm:$0xff] %v1019
          %1056 = vst [vmem:[%s322 + $0xe8] sm:$0xff] %v1021
          %1057 = vst [vmem:[%s322 + $0xf0] sm:$0xff] %v1023
          %1058 = vst [vmem:[%s322 + $0xf8] sm:$0xff] %v1025
        $region68: #{tpu_custom_call.1} parent=43 // pred_fallthru
          _
        %s1059 = sand.u32 %s183, 1
        %s1060 = scalar_lea.sflag [#allocation9], %s1059
        %s1061 = sand.u32 %s183, 1
        %s1062 = smul.addr %s1061, 256
        %s1063 = scalar_lea.vmem [#allocation13], %s1062
        // Predicated region
        $region73: #{tpu_custom_call.1} parent=43 // pred_check
          %p1064 = pneg %p193
        $region74: #{tpu_custom_call.1} parent=43 // pred_check_branch
          %1066 = sbr.rel (%p1064) target = $region76
        $region75: #{tpu_custom_call.1} parent=43 // pred_region
          %s1067 = smul.u32 %s29, %s28
          %s1068 = smul.u32 16, %s1067
          %s1070 = ssub.s32 4096, 4096
          %1071 = vsyncadd %s1060, %s1070
          %s1072 = smul.addr %s1068, 2
          %s1073 = smul.addr %s1072, 128
          %s1074 = scalar_lea.hbm %s6, %s1073
          %s1075 = sshll.u32 %s1063, 4
          %s1076 = int_to_ptr.vmem [resolvable:$true] %s1075
          %1081 = dma.vmem_to_hbm [thread:$0]  %s1076, 4096, %s1074, %s1060, 256, 256, 16
        $region76: #{tpu_custom_call.1} parent=43 // pred_fallthru
          _
      $region44: #{tpu_custom_call.1} parent=5 // pred_fallthru
        _
      %p1082 = scmp.le.s32.totalorder 2, %s19
      // Predicated region
      $region77: #{tpu_custom_call.1} parent=5 // pred_check
        %p1083 = pneg %p1082
      $region78: #{tpu_custom_call.1} parent=5 // pred_check_branch
        %1085 = sbr.rel (%p1083) target = $region80
      $region79: #{tpu_custom_call.1} parent=5 // pred_region
        %s1086 = ssub.s32 %s19, 2
        // Predicated region
        $region81: #{tpu_custom_call.1} parent=79 // pred_check
          %p1087 = pneg %p199
        $region82: #{tpu_custom_call.1} parent=79 // pred_check_branch
          %1089 = sbr.rel (%p1087) target = $region84
        $region83: #{tpu_custom_call.1} parent=79 // pred_region
          %s1090 = sand.u32 %s184, 1
          %s1091 = scalar_lea.sflag [#allocation9], %s1090
          %s1092 = sand.u32 %s184, 1
          %s1093 = smul.addr %s1092, 256
          %s1094 = scalar_lea.vmem [#allocation13], %s1093
          %1095 = dma.done %s1091, 4096
        $region84: #{tpu_custom_call.1} parent=79 // pred_fallthru
          _
      $region80: #{tpu_custom_call.1} parent=5 // pred_fallthru
        _
    $region6: #{tpu_custom_call.1} parent=1 // loop_footer
      %s23 = sadd.s32 1, %s19
    $region7: #{tpu_custom_call.1} parent=1 // loop_footer_branch
      %18 = sbr.rel target = $region3
    $region8: #{tpu_custom_call.1} parent=1 // loop_exit
      _
    %1096 = vsyncpa [#allocation8], 1
    %s1097 = scalar_lea.sflag [#allocation8], 1
    %1098 = vsyncpa %s1097, 1
    %1099 = vsyncpa [#allocation11], 1
    %1100 = vsyncpa [#allocation9], 1
    %s1101 = scalar_lea.sflag [#allocation9], 1
    %1102 = vsyncpa %s1101, 1

</llo_original>
